<compile_context>
chip_gen: v7x
topology: tpu7x:2x2x1
jax: 0.10.0
libtpu: 0.0.40
codegen_flags: <defaults>
</compile_context>

<pallas_src>
import math

import jax
import jax.numpy as jnp
from jax import lax
from jax.experimental import pallas as pl
from jax.experimental.pallas import tpu as pltpu

_MiB = 1024 * 1024


# --------------------------------------------------------------------------
# Kernels
# --------------------------------------------------------------------------
def _attention_kernel(x_ref, w_ref, len_ref, weighted_ref, attn_ref):
    """Single-pass kernel: whole sequence for a batch tile is resident."""
    TB, L, _ = x_ref.shape
    x = x_ref[...]                                  # input dtype; no f32 tile copy
    w = w_ref[...].astype(x.dtype)                  # (1, H)

    # scores = bmm(inputs, w^T): input-dtype multiply, f32 accumulation (VPU+XLU).
    scores = jnp.sum(x * w[None, :, :], axis=-1, dtype=jnp.float32)   # (TB, L)

    # Fused softmax(relu(scores)) + length mask + renormalization. The first
    # softmax denominator cancels against the renormalization, so one masked
    # sum / one exact reciprocal is mathematically identical.
    r = jnp.maximum(scores, jnp.float32(0.0))
    r = r - jnp.max(r, axis=-1, keepdims=True)      # numerical stability
    e = jnp.exp(r)                                  # EUP
    pos = lax.broadcasted_iota(jnp.int32, (TB, L), 1)
    me = jnp.where(pos < len_ref[...], e, jnp.float32(0.0))
    denom = jnp.sum(me, axis=-1, keepdims=True)
    attn = me * pl.reciprocal(denom, approx=False)

    weighted_ref[...] = (x * attn.astype(x.dtype)[:, :, None]).astype(weighted_ref.dtype)
    attn_ref[...] = attn.astype(attn_ref.dtype)


def _stats_kernel(x_ref, w_ref, len_ref, m_ref, denom_ref):
    """Pass 1 of the sequence-tiled path: running max / masked-exp sum over L."""
    TB, TL, _ = x_ref.shape
    li = pl.program_id(1)

    @pl.when(li == 0)
    def _():
        # relu floors scores at 0, so 0 is a valid starting maximum.
        m_ref[...] = jnp.zeros_like(m_ref)
        denom_ref[...] = jnp.zeros_like(denom_ref)

    x = x_ref[...]
    w = w_ref[...].astype(x.dtype)
    scores = jnp.sum(x * w[None, :, :], axis=-1, dtype=jnp.float32)   # (TB, TL)
    r = jnp.maximum(scores, jnp.float32(0.0))

    pos = li * TL + lax.broadcasted_iota(jnp.int32, (TB, TL), 1)
    mask = pos < len_ref[...]

    m_old = m_ref[...]                                                # (TB, 1)
    m_new = jnp.maximum(m_old, jnp.max(r, axis=-1, keepdims=True))
    e = jnp.where(mask, jnp.exp(r - m_new), jnp.float32(0.0))
    denom_ref[...] = denom_ref[...] * jnp.exp(m_old - m_new) + jnp.sum(
        e, axis=-1, keepdims=True)
    m_ref[...] = m_new


def _apply_kernel(x_ref, w_ref, len_ref, m_ref, denom_ref, weighted_ref, attn_ref):
    """Pass 2 of the sequence-tiled path: normalize and emit outputs per tile."""
    TB, TL, _ = x_ref.shape
    li = pl.program_id(1)

    x = x_ref[...]
    w = w_ref[...].astype(x.dtype)
    scores = jnp.sum(x * w[None, :, :], axis=-1, dtype=jnp.float32)
    r = jnp.maximum(scores, jnp.float32(0.0))

    pos = li * TL + lax.broadcasted_iota(jnp.int32, (TB, TL), 1)
    mask = pos < len_ref[...]
    e = jnp.where(mask, jnp.exp(r - m_ref[...]), jnp.float32(0.0))
    attn = e * pl.reciprocal(denom_ref[...], approx=False)

    weighted_ref[...] = (x * attn.astype(x.dtype)[:, :, None]).astype(weighted_ref.dtype)
    attn_ref[...] = attn.astype(attn_ref.dtype)


# --------------------------------------------------------------------------
# Tiling / VMEM planning
# --------------------------------------------------------------------------
def _round_up(x, m):
    return ((x + m - 1) // m) * m


def _cdiv(a, b):
    return -(-a // b)


def _vmem_budgets():
    """Return (io_budget_bytes, vmem_limit_bytes) for the current TPU generation."""
    try:
        cap = int(pltpu.get_tpu_info().vmem_capacity_bytes)
    except Exception:
        cap = None
    if cap is None:
        # Unknown part: conservative numbers that fit every supported generation.
        return 16 * _MiB, 40 * _MiB
    if cap <= 80 * _MiB:
        # v7x-class TensorCore (64 MiB physical VMEM): keep the working set
        # ~20 MiB and the scoped limit well under physical capacity.
        limit = min(48 * _MiB, (cap * 3) // 4)
        return min(20 * _MiB, limit // 2), limit
    # v5e / v6e class (128 MiB physical): raise the scoped limit far above the
    # 16/32 MiB defaults and spend it on bigger tiles (roofline lever).
    limit = min(104 * _MiB, (cap * 4) // 5)
    return min(56 * _MiB, limit // 2), limit


def _plan_tiles(B, L, H, itemsize, io_budget):
    """Return ("batch", tb, None) or ("seq", tb, tl)."""
    pack = 32 // itemsize              # sublane row packing: f32->8, bf16->16, int8->32
    lane_H = _round_up(H, 128)

    def row_bytes(tl):
        # Honest per-(batch row, seq chunk) VMEM cost at the padded VMEM layout:
        # double-buffered I/O blocks (x, weighted, attn, lengths/stats) plus the
        # in-kernel f32 temporaries (transient f32 product + score/exp vectors).
        sub = _round_up(tl, pack)
        lane = _round_up(tl, 128)
        io = 2 * (2 * sub * lane_H * itemsize + lane * itemsize + 4 * 128 * 4)
        tmp = sub * lane_H * 4 + 8 * lane * 4
        return io + tmp

    full = row_bytes(L)
    min_tb = B if B <= pack else pack
    if min_tb * full <= io_budget:
        max_tb = io_budget // full
        tb = B if B <= max_tb else max(pack, (max_tb // pack) * pack)
        if B > pack:
            # Keep >= 2 grid blocks so both v7x TensorCores get work
            # (harmless ~0.35us extra grid step on single-TC chips).
            tb = min(tb, _round_up(_cdiv(B, 2), pack))
            tb = min(tb, _round_up(B, pack))
        return "batch", tb, None

    # A single batch row no longer fits: tile the sequence axis too and use the
    # two-pass (stats + apply) kernels.
    tb = B if B <= pack else pack
    tl = 128
    l_cap = _round_up(L, 128)
    while tl + 128 <= l_cap and tb * row_bytes(tl + 128) <= io_budget:
        tl += 128
    return "seq", tb, min(tl, l_cap)


# --------------------------------------------------------------------------
# Wrappers
# --------------------------------------------------------------------------
def _forward_batch_tiled(inputs, w, lengths_2d, tb, vmem_limit):
    B, L, H = inputs.shape
    dtype = inputs.dtype
    itemsize = jnp.dtype(dtype).itemsize
    n_b = _cdiv(B, tb)
    b_pad = n_b * tb
    if b_pad != B:
        inputs = jnp.pad(inputs, ((0, b_pad - B), (0, 0), (0, 0)))
        # Padded rows get full length so the renormalization never divides by 0.
        lengths_2d = jnp.pad(lengths_2d, ((0, b_pad - B), (0, 0)), constant_values=L)

    cost = pl.CostEstimate(
        flops=int(b_pad * L * (3 * H + 10)),
        transcendentals=int(b_pad * L),
        bytes_accessed=int(2 * b_pad * L * H * itemsize + 2 * b_pad * L * itemsize),
    )

    weighted, attn = pl.pallas_call(
        _attention_kernel,
        out_shape=(
            jax.ShapeDtypeStruct((b_pad, L, H), dtype),
            jax.ShapeDtypeStruct((b_pad, L), dtype),
        ),
        grid=(n_b,),
        in_specs=[
            pl.BlockSpec((tb, L, H), lambda b: (b, 0, 0)),
            pl.BlockSpec((1, H), lambda b: (0, 0)),
            pl.BlockSpec((tb, 1), lambda b: (b, 0)),
        ],
        out_specs=(
            pl.BlockSpec((tb, L, H), lambda b: (b, 0, 0)),
            pl.BlockSpec((tb, L), lambda b: (b, 0)),
        ),
        compiler_params=pltpu.CompilerParams(
            dimension_semantics=("parallel",),
            vmem_limit_bytes=int(vmem_limit),
        ),
        cost_estimate=cost,
    )(inputs, w, lengths_2d)

    if b_pad != B:
        weighted = weighted[:B]
        attn = attn[:B]
    return weighted, attn


def _forward_seq_tiled(inputs, w, lengths_2d, tb, tl, vmem_limit):
    B, L, H = inputs.shape
    dtype = inputs.dtype
    itemsize = jnp.dtype(dtype).itemsize
    n_b = _cdiv(B, tb)
    b_pad = n_b * tb
    n_l = _cdiv(L, tl)
    l_pad = n_l * tl
    if b_pad != B or l_pad != L:
        inputs = jnp.pad(inputs, ((0, b_pad - B), (0, l_pad - L), (0, 0)))
        lengths_2d = jnp.pad(lengths_2d, ((0, b_pad - B), (0, 0)), constant_values=L)

    x_spec = pl.BlockSpec((tb, tl, H), lambda b, l: (b, l, 0))
    w_spec = pl.BlockSpec((1, H), lambda b, l: (0, 0))
    len_spec = pl.BlockSpec((tb, 1), lambda b, l: (b, 0))
    stat_spec = pl.BlockSpec((tb, 1), lambda b, l: (b, 0))

    # Pass 1: per-row running max / masked-exp sum over the sequence axis.
    m, denom = pl.pallas_call(
        _stats_kernel,
        out_shape=(
            jax.ShapeDtypeStruct((b_pad, 1), jnp.float32),
            jax.ShapeDtypeStruct((b_pad, 1), jnp.float32),
        ),
        grid=(n_b, n_l),
        in_specs=[x_spec, w_spec, len_spec],
        out_specs=(stat_spec, stat_spec),
        compiler_params=pltpu.CompilerParams(
            dimension_semantics=("parallel", "arbitrary"),
            vmem_limit_bytes=int(vmem_limit),
        ),
        cost_estimate=pl.CostEstimate(
            flops=int(b_pad * l_pad * (2 * H + 8)),
            transcendentals=int(b_pad * l_pad),
            bytes_accessed=int(b_pad * l_pad * H * itemsize),
        ),
    )(inputs, w, lengths_2d)

    # Pass 2: recompute scores per tile, normalize and emit attn / weighted.
    weighted, attn = pl.pallas_call(
        _apply_kernel,
        out_shape=(
            jax.ShapeDtypeStruct((b_pad, l_pad, H), dtype),
            jax.ShapeDtypeStruct((b_pad, l_pad), dtype),
        ),
        grid=(n_b, n_l),
        in_specs=[x_spec, w_spec, len_spec, stat_spec, stat_spec],
        out_specs=(
            pl.BlockSpec((tb, tl, H), lambda b, l: (b, l, 0)),
            pl.BlockSpec((tb, tl), lambda b, l: (b, l)),
        ),
        compiler_params=pltpu.CompilerParams(
            dimension_semantics=("parallel", "parallel"),
            vmem_limit_bytes=int(vmem_limit),
        ),
        cost_estimate=pl.CostEstimate(
            flops=int(b_pad * l_pad * (3 * H + 10)),
            transcendentals=int(b_pad * l_pad),
            bytes_accessed=int(2 * b_pad * l_pad * H * itemsize),
        ),
    )(inputs, w, lengths_2d, m, denom)

    return weighted[:B, :L], attn[:B, :L]


def attention_forward(inputs, attention_weights, lengths, *, io_budget_bytes=None):
    """inputs: (B, L, H); attention_weights: (1, H); lengths: (B,) int."""
    B, L, H = inputs.shape
    itemsize = jnp.dtype(inputs.dtype).itemsize
    io_budget, vmem_limit = _vmem_budgets()
    if io_budget_bytes is not None:      # test / tuning override
        io_budget = int(io_budget_bytes)

    mode, tb, tl = _plan_tiles(B, L, H, itemsize, io_budget)
    lengths_2d = lengths.reshape(B, 1).astype(jnp.int32)
    if mode == "batch":
        return _forward_batch_tiled(inputs, attention_weights, lengths_2d, tb, vmem_limit)
    return _forward_seq_tiled(inputs, attention_weights, lengths_2d, tb, tl, vmem_limit)


def _reference(inputs, attention_weights, lengths):
    """Pure-JAX reference matching the PyTorch forward exactly."""
    B, L, H = inputs.shape
    scores = jnp.einsum("blh,h->bl", inputs, attention_weights[0])
    attn = jax.nn.softmax(jnp.maximum(scores, 0.0), axis=-1)
    pos = jnp.arange(L)[None, :]
    mask = (pos < lengths[:, None]).astype(attn.dtype)
    masked = attn * mask
    attn = masked / jnp.sum(masked, axis=-1, keepdims=True)
    weighted = inputs * attn[:, :, None]
    return weighted, attn


if __name__ == "__main__":
    key = jax.random.PRNGKey(0)
    k_x, k_w, k_x2 = jax.random.split(key, 3)

    # Shapes consistent with the module: batch=2, max_len(seq)=8, hidden_dim=32.
    B, L, H = 2, 8, 32
    inputs = jax.random.normal(k_x, (B, L, H), dtype=jnp.float32)

    # xavier_uniform_ init for attention_weights of shape (1, H)
    bound = math.sqrt(6.0 / (1 + H))
    attention_weights = jax.random.uniform(
        k_w, (1, H), dtype=jnp.float32, minval=-bound, maxval=bound
    )
    lengths = jnp.array([8, 5], dtype=jnp.int32)     # second sequence is padded

    weighted, attentions = attention_forward(inputs, attention_weights, lengths)
    jax.block_until_ready((weighted, attentions))

    ref_w, ref_a = _reference(inputs, attention_weights, lengths)
    assert jnp.allclose(weighted, ref_w, atol=1e-5, rtol=1e-5)
    assert jnp.allclose(attentions, ref_a, atol=1e-5, rtol=1e-5)
    assert jnp.allclose(jnp.sum(attentions, axis=-1), 1.0, atol=1e-5)

    # Exercise the sequence-tiled (two-pass) fallback path at a small size by
    # forcing a tiny I/O budget (n_l = 2 so the online max/sum accumulation runs).
    B2, L2 = 2, 200
    inputs2 = jax.random.normal(k_x2, (B2, L2, H), dtype=jnp.float32)
    lengths2 = jnp.array([200, 77], dtype=jnp.int32)
    w2, a2 = attention_forward(inputs2, attention_weights, lengths2,
                               io_budget_bytes=1024)
    jax.block_until_ready((w2, a2))
    ref_w2, ref_a2 = _reference(inputs2, attention_weights, lengths2)
    assert jnp.allclose(w2, ref_w2, atol=1e-5, rtol=1e-5)
    assert jnp.allclose(a2, ref_a2, atol=1e-5, rtol=1e-5)

    print("KERNEL_OK")
</pallas_src>

<mosaic_0001>
module attributes {stable_mosaic.version = 11 : i64} {
  func.func @_attention_kernel(%arg0: i32, %arg1: memref<2x8x32xf32, #tpu.memory_space<vmem>>, %arg2: memref<1x32xf32, #tpu.memory_space<vmem>>, %arg3: memref<2x1xi32, #tpu.memory_space<vmem>>, %arg4: memref<2x8x32xf32, #tpu.memory_space<vmem>>, %arg5: memref<2x8xf32, #tpu.memory_space<vmem>>) attributes {dimension_semantics = [#tpu.dimension_semantics<parallel>], iteration_bounds = array<i64: 1>, scalar_prefetch = 0 : i64, scratch_operands = 0 : i64, tpu.core_type = #tpu.core_type<tc>, window_params = [{transform_indices = @transform_0, window_bounds = array<i64: 2, 8, 32>}, {pipeline_mode = #tpu.pipeline_mode<synchronous>, transform_indices = @transform_1, window_bounds = array<i64: 1, 32>}, {transform_indices = @transform_2, window_bounds = array<i64: 2, 1>}, {transform_indices = @transform_3, window_bounds = array<i64: 2, 8, 32>}, {transform_indices = @transform_4, window_bounds = array<i64: 2, 8>}]} {
    %c0 = arith.constant 0 : index
    %c0_0 = arith.constant 0 : index
    %c0_1 = arith.constant 0 : index
    %0 = vector.load %arg1[%c0, %c0_0, %c0_1] : memref<2x8x32xf32, #tpu.memory_space<vmem>>, vector<2x8x32xf32>
    %c0_2 = arith.constant 0 : index
    %c0_3 = arith.constant 0 : index
    %1 = vector.load %arg2[%c0_2, %c0_3] : memref<1x32xf32, #tpu.memory_space<vmem>>, vector<1x32xf32>
    %2 = vector.shape_cast %1 : vector<1x32xf32> to vector<1x1x32xf32>
    %3 = vector.broadcast %2 : vector<1x1x32xf32> to vector<2x8x32xf32>
    %4 = arith.mulf %0, %3 : vector<2x8x32xf32>
    %cst = arith.constant dense<0.000000e+00> : vector<2x8xf32>
    %5 = vector.multi_reduction <add>, %4, %cst [2] : vector<2x8x32xf32> to vector<2x8xf32>
    %cst_4 = arith.constant 0.000000e+00 : f32
    %6 = vector.broadcast %cst_4 : f32 to vector<2x8xf32>
    %7 = arith.maximumf %5, %6 : vector<2x8xf32>
    %cst_5 = arith.constant dense<0xFF800000> : vector<2xf32>
    %8 = vector.multi_reduction <maximumf>, %7, %cst_5 [1] : vector<2x8xf32> to vector<2xf32>
    %9 = vector.shape_cast %8 : vector<2xf32> to vector<2x1xf32>
    %10 = vector.broadcast %9 : vector<2x1xf32> to vector<2x8xf32>
    %11 = arith.subf %7, %10 : vector<2x8xf32>
    %12 = math.exp %11 : vector<2x8xf32>
    %13 = tpu.iota {dimensions = array<i32: 1>} : vector<2x8xi32>
    %c0_6 = arith.constant 0 : index
    %c0_7 = arith.constant 0 : index
    %14 = vector.load %arg3[%c0_6, %c0_7] : memref<2x1xi32, #tpu.memory_space<vmem>>, vector<2x1xi32>
    %15 = vector.broadcast %14 : vector<2x1xi32> to vector<2x8xi32>
    %16 = arith.cmpi slt, %13, %15 : vector<2x8xi32>
    %cst_8 = arith.constant 0.000000e+00 : f32
    %17 = vector.broadcast %cst_8 : f32 to vector<2x8xf32>
    %18 = arith.select %16, %12, %17 : vector<2x8xi1>, vector<2x8xf32>
    %cst_9 = arith.constant dense<0.000000e+00> : vector<2xf32>
    %19 = vector.multi_reduction <add>, %18, %cst_9 [1] : vector<2x8xf32> to vector<2xf32>
    %20 = vector.shape_cast %19 : vector<2xf32> to vector<2x1xf32>
    %21 = tpu.reciprocal %20 : vector<2x1xf32> -> vector<2x1xf32>
    %22 = vector.broadcast %21 : vector<2x1xf32> to vector<2x8xf32>
    %23 = arith.mulf %18, %22 : vector<2x8xf32>
    %24 = vector.shape_cast %23 : vector<2x8xf32> to vector<2x8x1xf32>
    %25 = vector.broadcast %24 : vector<2x8x1xf32> to vector<2x8x32xf32>
    %26 = arith.mulf %0, %25 : vector<2x8x32xf32>
    %c0_10 = arith.constant 0 : index
    %c0_11 = arith.constant 0 : index
    %c0_12 = arith.constant 0 : index
    %27 = vector.load %arg4[%c0_10, %c0_11, %c0_12] : memref<2x8x32xf32, #tpu.memory_space<vmem>>, vector<2x8x32xf32>
    tpu.vector_store %arg4[%c0_10, %c0_11, %c0_12], %26 {strides = array<i32>} : memref<2x8x32xf32, #tpu.memory_space<vmem>>, vector<2x8x32xf32>,
    %c0_13 = arith.constant 0 : index
    %c0_14 = arith.constant 0 : index
    %28 = vector.load %arg5[%c0_13, %c0_14] : memref<2x8xf32, #tpu.memory_space<vmem>>, vector<2x8xf32>
    tpu.vector_store %arg5[%c0_13, %c0_14], %23 {strides = array<i32>} : memref<2x8xf32, #tpu.memory_space<vmem>>, vector<2x8xf32>,
    return
  }
  func.func @transform_0(%arg0: i32) -> (i32, i32, i32) {
    %c0_i32 = arith.constant 0 : i32
    %c0_i32_0 = arith.constant 0 : i32
    %c0_i32_1 = arith.constant 0 : i32
    return %arg0, %c0_i32, %c0_i32_0 : i32, i32, i32
  }
  func.func @transform_1(%arg0: i32) -> (i32, i32) {
    %c0_i32 = arith.constant 0 : i32
    %c0_i32_0 = arith.constant 0 : i32
    %c0_i32_1 = arith.constant 0 : i32
    return %c0_i32, %c0_i32_0 : i32, i32
  }
  func.func @transform_2(%arg0: i32) -> (i32, i32) {
    %c0_i32 = arith.constant 0 : i32
    %c0_i32_0 = arith.constant 0 : i32
    return %arg0, %c0_i32 : i32, i32
  }
  func.func @transform_3(%arg0: i32) -> (i32, i32, i32) {
    %c0_i32 = arith.constant 0 : i32
    %c0_i32_0 = arith.constant 0 : i32
    %c0_i32_1 = arith.constant 0 : i32
    return %arg0, %c0_i32, %c0_i32_0 : i32, i32, i32
  }
  func.func @transform_4(%arg0: i32) -> (i32, i32) {
    %c0_i32 = arith.constant 0 : i32
    %c0_i32_0 = arith.constant 0 : i32
    return %arg0, %c0_i32 : i32, i32
  }
}

</mosaic_0001>

<llo_original>
// kernel: tpu_custom_call.1
$region0: #{tpu_custom_call.1}
  #allocation0 [shape = 'u32[]', space=smem, size = 0x4, offset = 0x4, fixed_abs, tag = 'smem constant byte address 0x4 - core index']
  #allocation1 [shape = 'u32[144,128]{1,0:T(1,128)}', space=vmem, size = 0x12000, scoped, tag = 'internal scratch']
  %s0 = inlined_call_operand.hbm [shape: f32[2,8,32], index: 0, kind: input, shape index: {}]
  %s1 = inlined_call_operand.vmem [shape: f32[1,32], index: 1, kind: input, shape index: {}]
  %s2 = inlined_call_operand.vmem [shape: s32[2,1], index: 2, kind: input, shape index: {}]
  %s3 = inlined_call_operand.hbm [shape: f32[2,8,32], index: 3, kind: output, shape index: {0}]
  %s4 = inlined_call_operand.hbm [shape: f32[2,8], index: 4, kind: output, shape index: {1}]
  %5 = xla_tuple %s3, %s4
  %s6 = sld [smem:[#allocation0]]
  $region34: #{tpu_custom_call.1} parent=0
    _
  %s8 = ssub.s32 1, %s6
  %s9 = scalar_select 0, %s8, %s6
  $region1: #{tpu_custom_call.1} parent=0
    #allocation2 [shape = 'u8[8192]{0}', space=vmem, size = 0x2000, scoped, tag = 'input window, operand 0, single buffered']
    #allocation3 [shape = 's32[1]{0}', space=sflag, size = 0x4, scoped, tag = 'scoped memory for tpu_custom_call.1']
    #allocation4 [shape = 's32[1]{0}', space=sflag, size = 0x4, scoped, tag = 'scoped memory for tpu_custom_call.1']
    #allocation5 [shape = 'u8[8192]{0}', space=vmem, size = 0x2000, scoped, tag = 'output window, operand 0, single buffered']
    #allocation6 [shape = 'u8[1024]{0}', space=vmem, size = 0x400, scoped, tag = 'output window, operand 1, single buffered']
    #allocation7 [shape = 's32[1]{0}', space=sflag, size = 0x4, scoped, tag = 'scoped memory for tpu_custom_call.1']
    %10 = vsyncpa [#allocation3], 0
    %11 = vsyncpa [#allocation4], 0
    %12 = vsyncpa [#allocation7], 0
    // Predicated region
    $region2: #{tpu_custom_call.1} parent=1 // pred_check
      _
    $region3: #{tpu_custom_call.1} parent=1 // pred_check_branch
      %14 = sbr.rel (0) target = $region5
    $region4: #{tpu_custom_call.1} parent=1 // pred_region
      %s16 = ssub.s32 256, 256
      %17 = vsyncadd [#allocation3], %s16
      %s18 = sshll.u32 [#allocation2], 4
      %s19 = int_to_ptr.vmem [resolvable:$true] %s18
      %24 = dma.hbm_to_vmem [thread:$0]  %s0, 256, %s19, [#allocation3], 128, 128, 8
    $region5: #{tpu_custom_call.1} parent=1 // pred_fallthru
      _
    // Predicated region
    $region6: #{tpu_custom_call.1} parent=1 // pred_check
      _
    $region7: #{tpu_custom_call.1} parent=1 // pred_check_branch
      %26 = sbr.rel (0) target = $region9
    $region8: #{tpu_custom_call.1} parent=1 // pred_region
      _
    $region9: #{tpu_custom_call.1} parent=1 // pred_fallthru
      _
    // Predicated region
    $region10: #{tpu_custom_call.1} parent=1 // pred_check
      _
    $region11: #{tpu_custom_call.1} parent=1 // pred_check_branch
      %28 = sbr.rel (0) target = $region13
    $region12: #{tpu_custom_call.1} parent=1 // pred_region
      _
    $region13: #{tpu_custom_call.1} parent=1 // pred_fallthru
      _
    // Predicated region
    $region14: #{tpu_custom_call.1} parent=1 // pred_check
      _
    $region15: #{tpu_custom_call.1} parent=1 // pred_check_branch
      %30 = sbr.rel (0) target = $region17
    $region16: #{tpu_custom_call.1} parent=1 // pred_region
      %31 = dma.done [#allocation3], 256
    $region17: #{tpu_custom_call.1} parent=1 // pred_fallthru
      _
    %v32 = vld [vmem:[#allocation2] sm:$0xff]
    %v33 = vld [vmem:[#allocation2 + $0x8] sm:$0xff]
    %v34 = vld [vmem:[%s1] sm:$0x1]
    %v36 = vlaneseq
    %v37 = vshrl.u32 %v36, 7
    %v38 = vsub.s32 0, %v37
    %v39 = vrot.slane %v34, %v38
    %v41 = vmul.f32 %v32, %v39
    %v42 = vmul.f32 %v33, %v39
    %vm43 = vcmask 261120
    %v44 = vsel %vm43, %v41, 0.0
    %45 = vadd.xlane.f32.xlu0 %v44
    %v46 = vpop.xlane.xlu0 %45
    %v47 = vsel %vm43, %v42, 0.0
    %48 = vadd.xlane.f32.xlu0 %v47
    %v49 = vpop.xlane.xlu0 %48
    %v50 = vmax.f32 %v46, 0.0
    %v51 = vmax.f32 %v49, 0.0
    %v54 = vlaneseq
    %v55 = vand.u32 %v54, 127
    %v56 = vlaneseq
    %v57 = vshrl.u32 %v56, 7
    %v58 = vsub.s32 %v55, %v57
    %v59 = vrot.slane %v50, %v58
    %v60 = vlaneseq
    %v61 = vshrl.u32 %v60, 7
    %v62 = vsub.s32 %v55, %v61
    %v63 = vrot.slane %v51, %v62
    %vm64 = vcmask 1041409
    %v65 = vsel %vm64, %v63, %v59
    %vm67 = vcmask 58368
    %v68 = vsel %vm67, %v65, -inf
    %69 = vmax.xlane.f32.xlu0 %v68
    %v70 = vpop.xlane.xlu0 %69
    %v72 = vlaneseq
    %v73 = vshrl.u32 %v72, 7
    %v74 = vsub.s32 0, %v73
    %v75 = vrot.slane %v70, %v74
    %v76 = vlaneseq
    %v77 = vshrl.u32 %v76, 7
    %v78 = vsub.s32 1, %v77
    %v79 = vrot.slane %v70, %v78
    %v82 = vsub.f32 %v50, %v75
    %v83 = vsub.f32 %v51, %v79
    %v84 = vmul.f32 %v82, 1.442695
    %v85 = vpow.pop %v84
    %v86 = vmul.f32 %v83, 1.442695
    %v87 = vpow.pop %v86
    %v88 = vld [vmem:[%s2] sm:$0x3]
    %89 = vset.pattern.permute.xlu0 0
    %90 = vperm.xlu0 %89, %v88
    %v91 = vpop.permute.xlu0 %90
    %vm92 = vcmp.lt.s32.totalorder %v55, %v91
    %95 = vset.pattern.permute.xlu0 0
    %96 = vperm.xlu0 %95, %v85
    %v97 = vpop.permute.xlu0 %96
    %98 = vset.pattern.permute.xlu0 0
    %99 = vperm.xlu0 %98, %v87
    %v100 = vpop.permute.xlu0 %99
    %v101 = vlaneseq
    %v102 = vshrl.u32 %v101, 7
    %v103 = vsub.s32 %v55, %v102
    %v104 = vrot.slane %v97, %v103
    %v105 = vlaneseq
    %v106 = vshrl.u32 %v105, 7
    %v107 = vsub.s32 %v55, %v106
    %v108 = vrot.slane %v100, %v107
    %v109 = vsel %vm64, %v108, %v104
    %v111 = vsel %vm92, %v109, 0.0
    %v112 = vsel %vm67, %v111, 0.0
    %113 = vadd.xlane.f32.xlu0 %v112
    %v114 = vpop.xlane.xlu0 %113
    %v115 = vrcp.pop %v114
    %v116 = vmul.f32 %v111, %v115
    %v117 = vlaneseq
    %v118 = vshrl.u32 %v117, 7
    %v119 = vsub.s32 0, %v118
    %v120 = vrot.slane %v116, %v119
    %122 = vbcast.lane.b32.xlu0 %v120, 256
    %v123 = vpop.permute.xlu0 %122
    %v124 = vlaneseq
    %v125 = vshrl.u32 %v124, 7
    %v126 = vsub.s32 1, %v125
    %v127 = vrot.slane %v116, %v126
    %129 = vbcast.lane.b32.xlu0 %v127, 256
    %v130 = vpop.permute.xlu0 %129
    %v131 = vmul.f32 %v32, %v123
    %v132 = vmul.f32 %v33, %v130
    %133 = vst.msk [vmem:[#allocation5] sm:$0xff] %vm43, %v131
    %134 = vst.msk [vmem:[#allocation5 + $0x8] sm:$0xff] %vm43, %v132
    %135 = vst.msk [vmem:[#allocation6] sm:$0x3] %vm67, %v116
    // Predicated region
    $region18: #{tpu_custom_call.1} parent=1 // pred_check
      _
    $region19: #{tpu_custom_call.1} parent=1 // pred_check_branch
      %137 = sbr.rel (0) target = $region21
    $region20: #{tpu_custom_call.1} parent=1 // pred_region
      %s139 = ssub.s32 256, 256
      %140 = vsyncadd [#allocation4], %s139
      %s141 = sshll.u32 [#allocation5], 4
      %s142 = int_to_ptr.vmem [resolvable:$true] %s141
      %147 = dma.vmem_to_hbm [thread:$0]  %s142, 256, %s3, [#allocation4], 128, 128, 8
    $region21: #{tpu_custom_call.1} parent=1 // pred_fallthru
      _
    // Predicated region
    $region22: #{tpu_custom_call.1} parent=1 // pred_check
      _
    $region23: #{tpu_custom_call.1} parent=1 // pred_check_branch
      %149 = sbr.rel (0) target = $region25
    $region24: #{tpu_custom_call.1} parent=1 // pred_region
      %s151 = ssub.s32 32, 32
      %152 = vsyncadd [#allocation7], %s151
      %s154 = sshll.u32 [#allocation6], 4
      %s155 = int_to_ptr.vmem [resolvable:$true] %s154
      %157 = dma.vmem_to_hbm [thread:$0]  %s155, 32, %s4, [#allocation7]
    $region25: #{tpu_custom_call.1} parent=1 // pred_fallthru
      _
    // Predicated region
    $region26: #{tpu_custom_call.1} parent=1 // pred_check
      _
    $region27: #{tpu_custom_call.1} parent=1 // pred_check_branch
      %159 = sbr.rel (0) target = $region29
    $region28: #{tpu_custom_call.1} parent=1 // pred_region
      %160 = dma.done [#allocation4], 256
    $region29: #{tpu_custom_call.1} parent=1 // pred_fallthru
      _
    // Predicated region
    $region30: #{tpu_custom_call.1} parent=1 // pred_check
      _
    $region31: #{tpu_custom_call.1} parent=1 // pred_check_branch
      %162 = sbr.rel (0) target = $region33
    $region32: #{tpu_custom_call.1} parent=1 // pred_region
      %163 = dma.done [#allocation7], 32
    $region33: #{tpu_custom_call.1} parent=1 // pred_fallthru
      _
    %164 = vsyncpa [#allocation3], 1
    %165 = vsyncpa [#allocation4], 1
    %166 = vsyncpa [#allocation7], 1

</llo_original>
